<compile_context>
chip_gen: v6e
topology: v6e:2x2x1
jax: 0.10.0
libtpu: 0.0.40
codegen_flags: <defaults>
</compile_context>

<pallas_src>
import jax
import jax.numpy as jnp
from jax.experimental import pallas as pl
from jax.experimental.pallas import tpu as pltpu

# ----------------------------- config ----------------------------------------
B = 2      # batch
S = 16     # source sequence length (number of encoder steps)
H = 128    # hidden_size — chosen lane-dense (multiple of 128) per perf feedback


# ----------------------------- kernel -----------------------------------------
def bahdanau_attention_kernel(enc_ref, dec_ref,
                              w1_ref, b1_ref, w2_ref, b2_ref, v_ref, bv_ref,
                              ctx_ref, attn_ref):
    """Fused Bahdanau attention for one (encoder_outputs, decoder_hidden) pair.

    enc_ref : (B, S, H)  encoder outputs                (VMEM)
    dec_ref : (B, H)     decoder hidden (last layer)    (VMEM)
    w1_ref  : (H, H)     W1^T    b1_ref: (1, H)
    w2_ref  : (H, H)     W2^T    b2_ref: (1, H)
    v_ref   : (H, 1)     V^T     bv_ref: (1, 1) scalar bias in SMEM
    ctx_ref : (B, H)     context output
    attn_ref: (B, S)     attention weights output
    """
    enc = enc_ref[...]                       # (B, S, H)
    dec = dec_ref[...]                       # (B, H)
    b, s, h = enc.shape

    # W1(encoder_outputs): one (B*S, H) x (H, H) MXU matmul for all positions.
    enc2d = enc.reshape(b * s, h)
    e1 = jnp.dot(enc2d, w1_ref[...], preferred_element_type=jnp.float32) + b1_ref[...]
    # W2(decoder_hidden): (B, H) x (H, H) MXU matmul.
    d2 = jnp.dot(dec, w2_ref[...], preferred_element_type=jnp.float32) + b2_ref[...]

    # Additive combine + tanh (EUP).
    t = jnp.tanh(e1.reshape(b, s, h) + d2[:, None, :])          # (B, S, H)

    # V projection -> raw scores (B, S) on the MXU.
    scores = jnp.dot(t.reshape(b * s, h), v_ref[...],
                     preferred_element_type=jnp.float32).reshape(b, s)
    scores = scores + bv_ref[0, 0]

    # Softmax over the S axis (== F.softmax(scores, dim=1) in the spec).
    m = jnp.max(scores, axis=-1, keepdims=True)
    w = jnp.exp(scores - m)
    denom = jnp.sum(w, axis=-1, keepdims=True)
    attn = w * pl.reciprocal(denom, approx=True)                 # (B, S), EUP recip

    # context = sum_S attn * enc, routed to the MXU as a batched contraction.
    ctx = jnp.einsum('bqs,bsh->bqh', attn[:, None, :], enc,
                     preferred_element_type=jnp.float32)         # (B, 1, H)

    ctx_ref[...] = ctx[:, 0, :]
    attn_ref[...] = attn


# ----------------------------- wrapper -----------------------------------------
def bahdanau_attention(params, encoder_outputs, decoder_hidden):
    # Mirrors `if decoder_hidden.dim() == 3: decoder_hidden = decoder_hidden[-1]`
    if decoder_hidden.ndim == 3:
        decoder_hidden = decoder_hidden[-1]

    b, s, h = encoder_outputs.shape
    vmem = pl.BlockSpec(memory_space=pltpu.MemorySpace.VMEM)
    smem = pl.BlockSpec(memory_space=pltpu.MemorySpace.SMEM)

    ctx, attn = pl.pallas_call(
        bahdanau_attention_kernel,
        out_shape=(jax.ShapeDtypeStruct((b, h), jnp.float32),
                   jax.ShapeDtypeStruct((b, s), jnp.float32)),
        in_specs=[vmem, vmem, vmem, vmem, vmem, vmem, vmem, smem],
        out_specs=(vmem, vmem),
    )(encoder_outputs, decoder_hidden,
      params["w1_t"], params["b1"], params["w2_t"], params["b2"],
      params["v_t"], params["bv"])

    # Restore the PyTorch return shapes: context (B,1,H), attn_weights (B,S,1).
    return ctx[:, None, :], attn[:, :, None]


# ----------------------------- reference (pure JAX) ----------------------------
def bahdanau_reference(params, encoder_outputs, decoder_hidden):
    if decoder_hidden.ndim == 3:
        decoder_hidden = decoder_hidden[-1]
    dh = decoder_hidden[:, None, :]                                        # (B,1,H)
    scores = (jnp.tanh(encoder_outputs @ params["w1_t"] + params["b1"]
                       + dh @ params["w2_t"] + params["b2"])
              @ params["v_t"]) + params["bv"][0, 0]                        # (B,S,1)
    attn = jax.nn.softmax(scores, axis=1)
    context = jnp.sum(attn * encoder_outputs, axis=1, keepdims=True)       # (B,1,H)
    return context, attn


# ----------------------------- init --------------------------------------------
def init_params(key):
    ks = jax.random.split(key, 6)
    bound = 1.0 / jnp.sqrt(jnp.float32(H))
    u = lambda k, shape: jax.random.uniform(k, shape, jnp.float32, -bound, bound)
    return {
        # nn.Linear weights stored pre-transposed: y = x @ W^T + b  ->  x @ w_t + b
        "w1_t": u(ks[0], (H, H)),
        "b1":   u(ks[1], (1, H)),
        "w2_t": u(ks[2], (H, H)),
        "b2":   u(ks[3], (1, H)),
        "v_t":  u(ks[4], (H, 1)),
        "bv":   u(ks[5], (1, 1)),
    }


# ----------------------------- main ---------------------------------------------
if __name__ == "__main__":
    key = jax.random.PRNGKey(0)
    kp, ke, kd = jax.random.split(key, 3)

    params = init_params(kp)
    encoder_outputs = jax.random.normal(ke, (B, S, H), jnp.float32)
    # (num_layers, B, H) to exercise the `.dim() == 3` branch like an RNN hidden state.
    decoder_hidden = jax.random.normal(kd, (1, B, H), jnp.float32)

    fwd = jax.jit(bahdanau_attention)
    context, attn_weights = fwd(params, encoder_outputs, decoder_hidden)
    context = jax.block_until_ready(context)
    attn_weights = jax.block_until_ready(attn_weights)

    assert context.shape == (B, 1, H)
    assert attn_weights.shape == (B, S, 1)

    ref_ctx, ref_attn = bahdanau_reference(params, encoder_outputs, decoder_hidden)
    assert jnp.allclose(context, ref_ctx, rtol=1e-3, atol=1e-3)
    assert jnp.allclose(attn_weights, ref_attn, rtol=1e-3, atol=1e-3)
    assert bool(jnp.allclose(jnp.sum(attn_weights, axis=1), 1.0, atol=1e-3))

    print("KERNEL_OK")
</pallas_src>

<mosaic_0001>
module attributes {stable_mosaic.version = 11 : i64} {
  func.func @bahdanau_attention_kernel(%arg0: memref<2x16x128xf32, #tpu.memory_space<vmem>>, %arg1: memref<2x128xf32, #tpu.memory_space<vmem>>, %arg2: memref<128x128xf32, #tpu.memory_space<vmem>>, %arg3: memref<1x128xf32, #tpu.memory_space<vmem>>, %arg4: memref<128x128xf32, #tpu.memory_space<vmem>>, %arg5: memref<1x128xf32, #tpu.memory_space<vmem>>, %arg6: memref<128x1xf32, #tpu.memory_space<vmem>>, %arg7: memref<1x1xf32, #tpu.memory_space<smem>>, %arg8: memref<2x128xf32, #tpu.memory_space<vmem>>, %arg9: memref<2x16xf32, #tpu.memory_space<vmem>>) attributes {dimension_semantics = [], scalar_prefetch = 0 : i64, scratch_operands = 0 : i64, tpu.core_type = #tpu.core_type<tc>} {
    %c0 = arith.constant 0 : index
    %c0_0 = arith.constant 0 : index
    %c0_1 = arith.constant 0 : index
    %0 = vector.load %arg0[%c0, %c0_0, %c0_1] : memref<2x16x128xf32, #tpu.memory_space<vmem>>, vector<2x16x128xf32>
    %c0_2 = arith.constant 0 : index
    %c0_3 = arith.constant 0 : index
    %1 = vector.load %arg1[%c0_2, %c0_3] : memref<2x128xf32, #tpu.memory_space<vmem>>, vector<2x128xf32>
    %2 = vector.shape_cast %0 : vector<2x16x128xf32> to vector<32x128xf32>
    %c0_4 = arith.constant 0 : index
    %c0_5 = arith.constant 0 : index
    %3 = vector.load %arg2[%c0_4, %c0_5] : memref<128x128xf32, #tpu.memory_space<vmem>>, vector<128x128xf32>
    %cst = arith.constant dense<0.000000e+00> : vector<32x128xf32>
    %4 = tpu.matmul %2, %3, %cst {dimension_numbers = #tpu.dot_dimension_numbers<[1], [0], [0], [1], [0, 0, 1, 1], [], []>} : vector<32x128xf32>, vector<128x128xf32>, vector<32x128xf32> -> vector<32x128xf32>
    %c0_6 = arith.constant 0 : index
    %c0_7 = arith.constant 0 : index
    %5 = vector.load %arg3[%c0_6, %c0_7] : memref<1x128xf32, #tpu.memory_space<vmem>>, vector<1x128xf32>
    %6 = vector.broadcast %5 : vector<1x128xf32> to vector<32x128xf32>
    %7 = arith.addf %4, %6 : vector<32x128xf32>
    %c0_8 = arith.constant 0 : index
    %c0_9 = arith.constant 0 : index
    %8 = vector.load %arg4[%c0_8, %c0_9] : memref<128x128xf32, #tpu.memory_space<vmem>>, vector<128x128xf32>
    %cst_10 = arith.constant dense<0.000000e+00> : vector<2x128xf32>
    %9 = tpu.matmul %1, %8, %cst_10 {dimension_numbers = #tpu.dot_dimension_numbers<[1], [0], [0], [1], [0, 0, 1, 1], [], []>} : vector<2x128xf32>, vector<128x128xf32>, vector<2x128xf32> -> vector<2x128xf32>
    %c0_11 = arith.constant 0 : index
    %c0_12 = arith.constant 0 : index
    %10 = vector.load %arg5[%c0_11, %c0_12] : memref<1x128xf32, #tpu.memory_space<vmem>>, vector<1x128xf32>
    %11 = vector.broadcast %10 : vector<1x128xf32> to vector<2x128xf32>
    %12 = arith.addf %9, %11 : vector<2x128xf32>
    %13 = vector.shape_cast %7 : vector<32x128xf32> to vector<2x16x128xf32>
    %14 = vector.shape_cast %12 : vector<2x128xf32> to vector<2x1x128xf32>
    %15 = vector.broadcast %14 : vector<2x1x128xf32> to vector<2x16x128xf32>
    %16 = arith.addf %13, %15 : vector<2x16x128xf32>
    %17 = math.tanh %16 : vector<2x16x128xf32>
    %18 = vector.shape_cast %17 : vector<2x16x128xf32> to vector<32x128xf32>
    %c0_13 = arith.constant 0 : index
    %c0_14 = arith.constant 0 : index
    %19 = vector.load %arg6[%c0_13, %c0_14] : memref<128x1xf32, #tpu.memory_space<vmem>>, vector<128x1xf32>
    %cst_15 = arith.constant dense<0.000000e+00> : vector<32x1xf32>
    %20 = tpu.matmul %18, %19, %cst_15 {dimension_numbers = #tpu.dot_dimension_numbers<[1], [0], [0], [1], [0, 0, 1, 1], [], []>} : vector<32x128xf32>, vector<128x1xf32>, vector<32x1xf32> -> vector<32x1xf32>
    %21 = vector.shape_cast %20 : vector<32x1xf32> to vector<2x16xf32>
    %c0_16 = arith.constant 0 : index
    %c0_17 = arith.constant 0 : index
    %22 = memref.load %arg7[%c0_16, %c0_17] : memref<1x1xf32, #tpu.memory_space<smem>>
    %23 = vector.broadcast %22 : f32 to vector<2x16xf32>
    %24 = arith.addf %21, %23 : vector<2x16xf32>
    %cst_18 = arith.constant dense<0xFF800000> : vector<2xf32>
    %25 = vector.multi_reduction <maximumf>, %24, %cst_18 [1] : vector<2x16xf32> to vector<2xf32>
    %26 = vector.shape_cast %25 : vector<2xf32> to vector<2x1xf32>
    %27 = vector.broadcast %26 : vector<2x1xf32> to vector<2x16xf32>
    %28 = arith.subf %24, %27 : vector<2x16xf32>
    %29 = math.exp %28 : vector<2x16xf32>
    %cst_19 = arith.constant dense<0.000000e+00> : vector<2xf32>
    %30 = vector.multi_reduction <add>, %29, %cst_19 [1] : vector<2x16xf32> to vector<2xf32>
    %31 = vector.shape_cast %30 : vector<2xf32> to vector<2x1xf32>
    %32 = tpu.reciprocal %31 {approx = true} : vector<2x1xf32> -> vector<2x1xf32>
    %33 = vector.broadcast %32 : vector<2x1xf32> to vector<2x16xf32>
    %34 = arith.mulf %29, %33 : vector<2x16xf32>
    %35 = vector.shape_cast %34 : vector<2x16xf32> to vector<2x1x16xf32>
    "tpu.trace_start"() <{level = 10 : i32, message = "bqs,bsh->bqh"}> : () -> ()
    %cst_20 = arith.constant dense<0.000000e+00> : vector<2x1x128xf32>
    %36 = tpu.matmul %35, %0, %cst_20 {dimension_numbers = #tpu.dot_dimension_numbers<[2], [1], [1], [2], [0, 0, 0, 1, 1, 2], [0], [0]>} : vector<2x1x16xf32>, vector<2x16x128xf32>, vector<2x1x128xf32> -> vector<2x1x128xf32>
    "tpu.trace_stop"() : () -> ()
    %37 = vector.shape_cast %36 : vector<2x1x128xf32> to vector<2x128xf32>
    %c0_21 = arith.constant 0 : index
    %c0_22 = arith.constant 0 : index
    %38 = vector.load %arg8[%c0_21, %c0_22] : memref<2x128xf32, #tpu.memory_space<vmem>>, vector<2x128xf32>
    tpu.vector_store %arg8[%c0_21, %c0_22], %37 {strides = array<i32>} : memref<2x128xf32, #tpu.memory_space<vmem>>, vector<2x128xf32>,
    %c0_23 = arith.constant 0 : index
    %c0_24 = arith.constant 0 : index
    %39 = vector.load %arg9[%c0_23, %c0_24] : memref<2x16xf32, #tpu.memory_space<vmem>>, vector<2x16xf32>
    tpu.vector_store %arg9[%c0_23, %c0_24], %34 {strides = array<i32>} : memref<2x16xf32, #tpu.memory_space<vmem>>, vector<2x16xf32>,
    return
  }
}

</mosaic_0001>

<llo_original>
// kernel: bahdanau_attention.1
$region0: #{bahdanau_attention.1}
  #allocation0 [shape = 'u32[]', space=smem, size = 0x4, offset = 0x4, fixed_abs, tag = 'smem constant byte address 0x4 - core index']
  #allocation1 [shape = 'u32[144,128]{1,0:T(1,128)}', space=vmem, size = 0x12000, scoped, tag = 'internal scratch']
  #allocation2 [shape = 'f32[1,1]{1,0:T(1,128)S(6)}', space=smem, size = 0x200, scoped, tag = 'scoped memory for bahdanau_attention.1']
  %s0 = inlined_call_operand.hbm [shape: f32[2,16,128], index: 0, kind: input, shape index: {}]
  %s1 = inlined_call_operand.vmem [shape: f32[2,128], index: 1, kind: input, shape index: {}]
  %s2 = inlined_call_operand.vmem [shape: f32[128,128], index: 2, kind: input, shape index: {}]
  %s3 = inlined_call_operand.vmem [shape: f32[1,128], index: 3, kind: input, shape index: {}]
  %s4 = inlined_call_operand.hbm [shape: f32[128,128], index: 4, kind: input, shape index: {}]
  %s5 = inlined_call_operand.vmem [shape: f32[1,128], index: 5, kind: input, shape index: {}]
  %s6 = inlined_call_operand.vmem [shape: f32[128,1], index: 6, kind: input, shape index: {}]
  %s7 = inlined_call_operand.<no memory space> [shape: f32[1,1], index: 7, kind: input, shape index: {}]
  %s8 = inlined_call_operand.hbm [shape: f32[2,128], index: 8, kind: output, shape index: {0}]
  %s9 = inlined_call_operand.hbm [shape: f32[2,16], index: 9, kind: output, shape index: {1}]
  %10 = xla_tuple %s8, %s9
  %s11 = sld [smem:[#allocation0]]
  $region58: #{bahdanau_attention.1} parent=0
    _
  %s13 = ssub.s32 1, %s11
  %s14 = scalar_select 0, %s13, %s11
  %15 = sst [smem:[#allocation2]] %s7
  $region1: #{bahdanau_attention.1} parent=0
    #allocation3 [shape = 'u8[16384]{0}', space=vmem, size = 0x4000, scoped, tag = 'input window, operand 0, single buffered']
    #allocation4 [shape = 's32[1]{0}', space=sflag, size = 0x4, scoped, tag = 'scoped memory for bahdanau_attention.1']
    #allocation5 [shape = 's32[1]{0}', space=sflag, size = 0x4, scoped, tag = 'scoped memory for bahdanau_attention.1']
    #allocation6 [shape = 'u8[65536]{0}', space=vmem, size = 0x10000, scoped, tag = 'input window, operand 4, single buffered']
    #allocation7 [shape = 's32[1]{0}', space=sflag, size = 0x4, scoped, tag = 'scoped memory for bahdanau_attention.1']
    #allocation8 [shape = 'u8[1024]{0}', space=vmem, size = 0x400, scoped, tag = 'output window, operand 0, single buffered']
    #allocation9 [shape = 'u8[1024]{0}', space=vmem, size = 0x400, scoped, tag = 'output window, operand 1, single buffered']
    #allocation10 [shape = 's32[1]{0}', space=sflag, size = 0x4, scoped, tag = 'scoped memory for bahdanau_attention.1']
    %16 = vsyncpa [#allocation4], 0
    %17 = vsyncpa [#allocation7], 0
    %18 = vsyncpa [#allocation5], 0
    %19 = vsyncpa [#allocation10], 0
    // Predicated region
    $region2: #{bahdanau_attention.1} parent=1 // pred_check
      _
    $region3: #{bahdanau_attention.1} parent=1 // pred_check_branch
      %21 = sbr.rel (0) target = $region5
    $region4: #{bahdanau_attention.1} parent=1 // pred_region
      %s23 = ssub.s32 512, 512
      %24 = vsyncadd [#allocation4], %s23
      %s25 = sshll.u32 [#allocation3], 4
      %s26 = int_to_ptr.vmem [resolvable:$true] %s25
      %31 = dma.hbm_to_vmem [thread:$0]  %s0, 512, %s26, [#allocation4], 128, 128, 8
    $region5: #{bahdanau_attention.1} parent=1 // pred_fallthru
      _
    // Predicated region
    $region6: #{bahdanau_attention.1} parent=1 // pred_check
      _
    $region7: #{bahdanau_attention.1} parent=1 // pred_check_branch
      %33 = sbr.rel (0) target = $region9
    $region8: #{bahdanau_attention.1} parent=1 // pred_region
      _
    $region9: #{bahdanau_attention.1} parent=1 // pred_fallthru
      _
    // Predicated region
    $region10: #{bahdanau_attention.1} parent=1 // pred_check
      _
    $region11: #{bahdanau_attention.1} parent=1 // pred_check_branch
      %35 = sbr.rel (0) target = $region13
    $region12: #{bahdanau_attention.1} parent=1 // pred_region
      _
    $region13: #{bahdanau_attention.1} parent=1 // pred_fallthru
      _
    // Predicated region
    $region14: #{bahdanau_attention.1} parent=1 // pred_check
      _
    $region15: #{bahdanau_attention.1} parent=1 // pred_check_branch
      %37 = sbr.rel (0) target = $region17
    $region16: #{bahdanau_attention.1} parent=1 // pred_region
      _
    $region17: #{bahdanau_attention.1} parent=1 // pred_fallthru
      _
    // Predicated region
    $region18: #{bahdanau_attention.1} parent=1 // pred_check
      _
    $region19: #{bahdanau_attention.1} parent=1 // pred_check_branch
      %39 = sbr.rel (0) target = $region21
    $region20: #{bahdanau_attention.1} parent=1 // pred_region
      %s41 = ssub.s32 2048, 2048
      %42 = vsyncadd [#allocation7], %s41
      %s43 = sshll.u32 [#allocation6], 4
      %s44 = int_to_ptr.vmem [resolvable:$true] %s43
      %49 = dma.hbm_to_vmem [thread:$0]  %s4, 2048, %s44, [#allocation7], 128, 128, 8
    $region21: #{bahdanau_attention.1} parent=1 // pred_fallthru
      _
    // Predicated region
    $region22: #{bahdanau_attention.1} parent=1 // pred_check
      _
    $region23: #{bahdanau_attention.1} parent=1 // pred_check_branch
      %51 = sbr.rel (0) target = $region25
    $region24: #{bahdanau_attention.1} parent=1 // pred_region
      _
    $region25: #{bahdanau_attention.1} parent=1 // pred_fallthru
      _
    // Predicated region
    $region26: #{bahdanau_attention.1} parent=1 // pred_check
      _
    $region27: #{bahdanau_attention.1} parent=1 // pred_check_branch
      %53 = sbr.rel (0) target = $region29
    $region28: #{bahdanau_attention.1} parent=1 // pred_region
      _
    $region29: #{bahdanau_attention.1} parent=1 // pred_fallthru
      _
    // Predicated region
    $region30: #{bahdanau_attention.1} parent=1 // pred_check
      _
    $region31: #{bahdanau_attention.1} parent=1 // pred_check_branch
      %55 = sbr.rel (0) target = $region33
    $region32: #{bahdanau_attention.1} parent=1 // pred_region
      _
    $region33: #{bahdanau_attention.1} parent=1 // pred_fallthru
      _
    // Predicated region
    $region34: #{bahdanau_attention.1} parent=1 // pred_check
      _
    $region35: #{bahdanau_attention.1} parent=1 // pred_check_branch
      %57 = sbr.rel (0) target = $region37
    $region36: #{bahdanau_attention.1} parent=1 // pred_region
      %58 = dma.done [#allocation4], 512
    $region37: #{bahdanau_attention.1} parent=1 // pred_fallthru
      _
    // Predicated region
    $region38: #{bahdanau_attention.1} parent=1 // pred_check
      _
    $region39: #{bahdanau_attention.1} parent=1 // pred_check_branch
      %60 = sbr.rel (0) target = $region41
    $region40: #{bahdanau_attention.1} parent=1 // pred_region
      %61 = dma.done [#allocation7], 2048
    $region41: #{bahdanau_attention.1} parent=1 // pred_fallthru
      _
    %v62 = vld [vmem:[#allocation3] sm:$0xff]
    %v63 = vld [vmem:[#allocation3 + $0x8] sm:$0xff]
    %v64 = vld [vmem:[#allocation3 + $0x10] sm:$0xff]
    %v65 = vld [vmem:[#allocation3 + $0x18] sm:$0xff]
    %v66 = vld [vmem:[%s1] sm:$0x3]
    %v67 = vld [vmem:[%s2] sm:$0xff]
    %v68 = vld [vmem:[%s2 + $0x8] sm:$0xff]
    %v69 = vld [vmem:[%s2 + $0x10] sm:$0xff]
    %v70 = vld [vmem:[%s2 + $0x18] sm:$0xff]
    %v71 = vld [vmem:[%s2 + $0x20] sm:$0xff]
    %v72 = vld [vmem:[%s2 + $0x28] sm:$0xff]
    %v73 = vld [vmem:[%s2 + $0x30] sm:$0xff]
    %v74 = vld [vmem:[%s2 + $0x38] sm:$0xff]
    %v75 = vld [vmem:[%s2 + $0x40] sm:$0xff]
    %v76 = vld [vmem:[%s2 + $0x48] sm:$0xff]
    %v77 = vld [vmem:[%s2 + $0x50] sm:$0xff]
    %v78 = vld [vmem:[%s2 + $0x58] sm:$0xff]
    %v79 = vld [vmem:[%s2 + $0x60] sm:$0xff]
    %v80 = vld [vmem:[%s2 + $0x68] sm:$0xff]
    %v81 = vld [vmem:[%s2 + $0x70] sm:$0xff]
    %v82 = vld [vmem:[%s2 + $0x78] sm:$0xff]
    %v83 = vld [vmem:[%s3] sm:$0x1]
    %v85 = vlaneseq
    %v86 = vshrl.u32 %v85, 7
    %v87 = vsub.s32 0, %v86
    %v88 = vrot.slane %v83, %v87
    %90 = vmatprep.subr.mxu0 0.0
    %91 = vmatpush1.msra.mxu0 %v82
    %92 = vmatprep.subr.mxu0 0.0
    %93 = vmatpush1.msra.mxu0 %v81
    %94 = vmatprep.subr.mxu0 0.0
    %95 = vmatpush1.msra.mxu0 %v80
    %96 = vmatprep.subr.mxu0 0.0
    %97 = vmatpush1.msra.mxu0 %v79
    %98 = vmatprep.subr.mxu0 0.0
    %99 = vmatpush1.msra.mxu0 %v78
    %100 = vmatprep.subr.mxu0 0.0
    %101 = vmatpush1.msra.mxu0 %v77
    %102 = vmatprep.subr.mxu0 0.0
    %103 = vmatpush1.msra.mxu0 %v76
    %104 = vmatprep.subr.mxu0 0.0
    %105 = vmatpush1.msra.mxu0 %v75
    %106 = vmatprep.subr.mxu0 0.0
    %107 = vmatpush1.msra.mxu0 %v74
    %108 = vmatprep.subr.mxu0 0.0
    %109 = vmatpush1.msra.mxu0 %v73
    %110 = vmatprep.subr.mxu0 0.0
    %111 = vmatpush1.msra.mxu0 %v72
    %112 = vmatprep.subr.mxu0 0.0
    %113 = vmatpush1.msra.mxu0 %v71
    %114 = vmatprep.subr.mxu0 0.0
    %115 = vmatpush1.msra.mxu0 %v70
    %116 = vmatprep.subr.mxu0 0.0
    %117 = vmatpush1.msra.mxu0 %v69
    %118 = vmatprep.subr.mxu0 0.0
    %119 = vmatpush1.msra.mxu0 %v68
    %120 = vmatprep.subr.mxu0 0.0
    %121 = vmatpush1.msra.mxu0 %v67
    %122 = vmatprep.subr.mxu0 0.0
    %123 = vmatpush2.msra.mxu0 0.0
    %124 = vmatprep.subr.mxu0 0.0
    %125 = vmatpush2.msra.mxu0 0.0
    %126 = vmatprep.subr.mxu0 0.0
    %127 = vmatpush2.msra.mxu0 0.0
    %128 = vmatprep.subr.mxu0 0.0
    %129 = vmatpush2.msra.mxu0 0.0
    %130 = vmatprep.subr.mxu0 0.0
    %131 = vmatpush2.msra.mxu0 0.0
    %132 = vmatprep.subr.mxu0 0.0
    %133 = vmatpush2.msra.mxu0 0.0
    %134 = vmatprep.subr.mxu0 0.0
    %135 = vmatpush2.msra.mxu0 0.0
    %136 = vmatprep.subr.mxu0 0.0
    %137 = vmatpush2.msra.mxu0 0.0
    %138 = vmatprep.subr.mxu0 0.0
    %139 = vmatpush2.msra.mxu0 0.0
    %140 = vmatprep.subr.mxu0 0.0
    %141 = vmatpush2.msra.mxu0 0.0
    %142 = vmatprep.subr.mxu0 0.0
    %143 = vmatpush2.msra.mxu0 0.0
    %144 = vmatprep.subr.mxu0 0.0
    %145 = vmatpush2.msra.mxu0 0.0
    %146 = vmatprep.subr.mxu0 0.0
    %147 = vmatpush2.msra.mxu0 0.0
    %148 = vmatprep.subr.mxu0 0.0
    %149 = vmatpush2.msra.mxu0 0.0
    %150 = vmatprep.subr.mxu0 0.0
    %151 = vmatpush2.msra.mxu0 0.0
    %152 = vmatprep.subr.mxu0 0.0
    %153 = vmatpush2.msra.mxu0 0.0
    %154 = vmatprep.mubr.f32.mxu0 0.0
    %155 = vmatmul.mubr.f32.gmra.mxu0 %v62
    %v156 = vpop.f32.mrf.mxu0
    %v157 = vadd.f32 %v88, %v156
    %v158 = vpop.f32.mrf.mxu0
    %159 = vmatprep.mubr.f32.mxu0 0.0
    %160 = vmatmul.mubr.f32.gmra.mxu0 %v63
    %v161 = vpop.f32.mrf.mxu0
    %v162 = vadd.f32 %v88, %v161
    %v163 = vpop.f32.mrf.mxu0
    %164 = vmatprep.mubr.f32.mxu0 0.0
    %165 = vmatmul.mubr.f32.gmra.mxu0 %v64
    %v166 = vpop.f32.mrf.mxu0
    %v167 = vadd.f32 %v88, %v166
    %v168 = vpop.f32.mrf.mxu0
    %169 = vmatprep.mubr.f32.mxu0 0.0
    %170 = vmatmul.mubr.f32.gmra.mxu0 %v65
    %v171 = vpop.f32.mrf.mxu0
    %v172 = vadd.f32 %v88, %v171
    %v173 = vpop.f32.mrf.mxu0
    %174 = vdwg.mxu0
    %v175 = vld [vmem:[#allocation6] sm:$0xff]
    %v176 = vld [vmem:[#allocation6 + $0x8] sm:$0xff]
    %v177 = vld [vmem:[#allocation6 + $0x10] sm:$0xff]
    %v178 = vld [vmem:[#allocation6 + $0x18] sm:$0xff]
    %v179 = vld [vmem:[#allocation6 + $0x20] sm:$0xff]
    %v180 = vld [vmem:[#allocation6 + $0x28] sm:$0xff]
    %v181 = vld [vmem:[#allocation6 + $0x30] sm:$0xff]
    %v182 = vld [vmem:[#allocation6 + $0x38] sm:$0xff]
    %v183 = vld [vmem:[#allocation6 + $0x40] sm:$0xff]
    %v184 = vld [vmem:[#allocation6 + $0x48] sm:$0xff]
    %v185 = vld [vmem:[#allocation6 + $0x50] sm:$0xff]
    %v186 = vld [vmem:[#allocation6 + $0x58] sm:$0xff]
    %v187 = vld [vmem:[#allocation6 + $0x60] sm:$0xff]
    %v188 = vld [vmem:[#allocation6 + $0x68] sm:$0xff]
    %v189 = vld [vmem:[#allocation6 + $0x70] sm:$0xff]
    %v190 = vld [vmem:[#allocation6 + $0x78] sm:$0xff]
    %v191 = vld [vmem:[%s5] sm:$0x1]
    %v193 = vlaneseq
    %v194 = vshrl.u32 %v193, 7
    %v195 = vsub.s32 0, %v194
    %v196 = vrot.slane %v191, %v195
    %198 = vmatprep.subr.mxu0 0.0
    %199 = vmatpush1.msra.mxu0 %v190
    %200 = vmatprep.subr.mxu0 0.0
    %201 = vmatpush1.msra.mxu0 %v189
    %202 = vmatprep.subr.mxu0 0.0
    %203 = vmatpush1.msra.mxu0 %v188
    %204 = vmatprep.subr.mxu0 0.0
    %205 = vmatpush1.msra.mxu0 %v187
    %206 = vmatprep.subr.mxu0 0.0
    %207 = vmatpush1.msra.mxu0 %v186
    %208 = vmatprep.subr.mxu0 0.0
    %209 = vmatpush1.msra.mxu0 %v185
    %210 = vmatprep.subr.mxu0 0.0
    %211 = vmatpush1.msra.mxu0 %v184
    %212 = vmatprep.subr.mxu0 0.0
    %213 = vmatpush1.msra.mxu0 %v183
    %214 = vmatprep.subr.mxu0 0.0
    %215 = vmatpush1.msra.mxu0 %v182
    %216 = vmatprep.subr.mxu0 0.0
    %217 = vmatpush1.msra.mxu0 %v181
    %218 = vmatprep.subr.mxu0 0.0
    %219 = vmatpush1.msra.mxu0 %v180
    %220 = vmatprep.subr.mxu0 0.0
    %221 = vmatpush1.msra.mxu0 %v179
    %222 = vmatprep.subr.mxu0 0.0
    %223 = vmatpush1.msra.mxu0 %v178
    %224 = vmatprep.subr.mxu0 0.0
    %225 = vmatpush1.msra.mxu0 %v177
    %226 = vmatprep.subr.mxu0 0.0
    %227 = vmatpush1.msra.mxu0 %v176
    %228 = vmatprep.subr.mxu0 0.0
    %229 = vmatpush1.msra.mxu0 %v175
    %230 = vmatprep.subr.mxu0 0.0
    %231 = vmatpush2.msra.mxu0 0.0
    %232 = vmatprep.subr.mxu0 0.0
    %233 = vmatpush2.msra.mxu0 0.0
    %234 = vmatprep.subr.mxu0 0.0
    %235 = vmatpush2.msra.mxu0 0.0
    %236 = vmatprep.subr.mxu0 0.0
    %237 = vmatpush2.msra.mxu0 0.0
    %238 = vmatprep.subr.mxu0 0.0
    %239 = vmatpush2.msra.mxu0 0.0
    %240 = vmatprep.subr.mxu0 0.0
    %241 = vmatpush2.msra.mxu0 0.0
    %242 = vmatprep.subr.mxu0 0.0
    %243 = vmatpush2.msra.mxu0 0.0
    %244 = vmatprep.subr.mxu0 0.0
    %245 = vmatpush2.msra.mxu0 0.0
    %246 = vmatprep.subr.mxu0 0.0
    %247 = vmatpush2.msra.mxu0 0.0
    %248 = vmatprep.subr.mxu0 0.0
    %249 = vmatpush2.msra.mxu0 0.0
    %250 = vmatprep.subr.mxu0 0.0
    %251 = vmatpush2.msra.mxu0 0.0
    %252 = vmatprep.subr.mxu0 0.0
    %253 = vmatpush2.msra.mxu0 0.0
    %254 = vmatprep.subr.mxu0 0.0
    %255 = vmatpush2.msra.mxu0 0.0
    %256 = vmatprep.subr.mxu0 0.0
    %257 = vmatpush2.msra.mxu0 0.0
    %258 = vmatprep.subr.mxu0 0.0
    %259 = vmatpush2.msra.mxu0 0.0
    %260 = vmatprep.subr.mxu0 0.0
    %261 = vmatpush2.msra.mxu0 0.0
    %262 = vmatprep.mubr.f32.mxu0 0.0
    %263 = vmatmul.mubr.f32.gmra.mxu0 %v66
    %v264 = vpop.f32.mrf.mxu0
    %v265 = vadd.f32 %v196, %v264
    %v266 = vpop.f32.mrf.mxu0
    %267 = vdwg.mxu0
    %v270 = vunpack.c.l.s4 1966171168
    %v271 = vunpack.c.0.s8 %v270
    %v272 = vlaneseq
    %v273 = vshrl.u32 %v272, 7
    %v274 = vsub.s32 %v271, %v273
    %v275 = vrot.slane %v265, %v274
    %v276 = vcombine.high %v275, %v275
    %v278 = vunpack.c.l.s4 1966171168
    %v279 = vunpack.c.0.s8 %v278
    %v280 = vlaneseq
    %v281 = vshrl.u32 %v280, 7
    %v282 = vsub.s32 %v279, %v281
    %v283 = vrot.slane %v275, %v282
    %v285 = vunpack.c.l.s4 1966171168
    %v286 = vunpack.c.0.s8 %v285
    %v287 = vlaneseq
    %v288 = vshrl.u32 %v287, 7
    %v289 = vsub.s32 %v286, %v288
    %v290 = vrot.slane %v276, %v289
    %v291 = vlaneseq
    %v292 = vshrl.u32 %v291, 7
    %v293 = vsub.s32 0, %v292
    %v294 = vrot.slane %v283, %v293
    %v295 = vlaneseq
    %v296 = vshrl.u32 %v295, 7
    %v297 = vsub.s32 0, %v296
    %v298 = vrot.slane %v290, %v297
    %v301 = vadd.f32 %v157, %v294
    %v302 = vadd.f32 %v162, %v294
    %v303 = vadd.f32 %v167, %v298
    %v304 = vadd.f32 %v172, %v298
    %v305 = vtanh.pop %v301
    %v306 = vtanh.pop %v302
    %v307 = vtanh.pop %v303
    %v308 = vtanh.pop %v304
    %v309 = vld [vmem:[%s6] sm:$0xff]
    %v310 = vld [vmem:[%s6 + $0x8] sm:$0xff]
    %v311 = vld [vmem:[%s6 + $0x10] sm:$0xff]
    %v312 = vld [vmem:[%s6 + $0x18] sm:$0xff]
    %v313 = vld [vmem:[%s6 + $0x20] sm:$0xff]
    %v314 = vld [vmem:[%s6 + $0x28] sm:$0xff]
    %v315 = vld [vmem:[%s6 + $0x30] sm:$0xff]
    %v316 = vld [vmem:[%s6 + $0x38] sm:$0xff]
    %v317 = vld [vmem:[%s6 + $0x40] sm:$0xff]
    %v318 = vld [vmem:[%s6 + $0x48] sm:$0xff]
    %v319 = vld [vmem:[%s6 + $0x50] sm:$0xff]
    %v320 = vld [vmem:[%s6 + $0x58] sm:$0xff]
    %v321 = vld [vmem:[%s6 + $0x60] sm:$0xff]
    %v322 = vld [vmem:[%s6 + $0x68] sm:$0xff]
    %v323 = vld [vmem:[%s6 + $0x70] sm:$0xff]
    %v324 = vld [vmem:[%s6 + $0x78] sm:$0xff]
    %325 = vmatprep.subr.mxu0 0.0
    %326 = vmatpush1.msra.mxu0 %v324
    %327 = vmatprep.subr.mxu0 0.0
    %328 = vmatpush1.msra.mxu0 %v323
    %329 = vmatprep.subr.mxu0 0.0
    %330 = vmatpush1.msra.mxu0 %v322
    %331 = vmatprep.subr.mxu0 0.0
    %332 = vmatpush1.msra.mxu0 %v321
    %333 = vmatprep.subr.mxu0 0.0
    %334 = vmatpush1.msra.mxu0 %v320
    %335 = vmatprep.subr.mxu0 0.0
    %336 = vmatpush1.msra.mxu0 %v319
    %337 = vmatprep.subr.mxu0 0.0
    %338 = vmatpush1.msra.mxu0 %v318
    %339 = vmatprep.subr.mxu0 0.0
    %340 = vmatpush1.msra.mxu0 %v317
    %341 = vmatprep.subr.mxu0 0.0
    %342 = vmatpush1.msra.mxu0 %v316
    %343 = vmatprep.subr.mxu0 0.0
    %344 = vmatpush1.msra.mxu0 %v315
    %345 = vmatprep.subr.mxu0 0.0
    %346 = vmatpush1.msra.mxu0 %v314
    %347 = vmatprep.subr.mxu0 0.0
    %348 = vmatpush1.msra.mxu0 %v313
    %349 = vmatprep.subr.mxu0 0.0
    %350 = vmatpush1.msra.mxu0 %v312
    %351 = vmatprep.subr.mxu0 0.0
    %352 = vmatpush1.msra.mxu0 %v311
    %353 = vmatprep.subr.mxu0 0.0
    %354 = vmatpush1.msra.mxu0 %v310
    %355 = vmatprep.subr.mxu0 0.0
    %356 = vmatpush1.msra.mxu0 %v309
    %357 = vmatprep.subr.mxu0 0.0
    %358 = vmatpush2.msra.mxu0 0.0
    %359 = vmatprep.subr.mxu0 0.0
    %360 = vmatpush2.msra.mxu0 0.0
    %361 = vmatprep.subr.mxu0 0.0
    %362 = vmatpush2.msra.mxu0 0.0
    %363 = vmatprep.subr.mxu0 0.0
    %364 = vmatpush2.msra.mxu0 0.0
    %365 = vmatprep.subr.mxu0 0.0
    %366 = vmatpush2.msra.mxu0 0.0
    %367 = vmatprep.subr.mxu0 0.0
    %368 = vmatpush2.msra.mxu0 0.0
    %369 = vmatprep.subr.mxu0 0.0
    %370 = vmatpush2.msra.mxu0 0.0
    %371 = vmatprep.subr.mxu0 0.0
    %372 = vmatpush2.msra.mxu0 0.0
    %373 = vmatprep.subr.mxu0 0.0
    %374 = vmatpush2.msra.mxu0 0.0
    %375 = vmatprep.subr.mxu0 0.0
    %376 = vmatpush2.msra.mxu0 0.0
    %377 = vmatprep.subr.mxu0 0.0
    %378 = vmatpush2.msra.mxu0 0.0
    %379 = vmatprep.subr.mxu0 0.0
    %380 = vmatpush2.msra.mxu0 0.0
    %381 = vmatprep.subr.mxu0 0.0
    %382 = vmatpush2.msra.mxu0 0.0
    %383 = vmatprep.subr.mxu0 0.0
    %384 = vmatpush2.msra.mxu0 0.0
    %385 = vmatprep.subr.mxu0 0.0
    %386 = vmatpush2.msra.mxu0 0.0
    %387 = vmatprep.subr.mxu0 0.0
    %388 = vmatpush2.msra.mxu0 0.0
    %389 = vmatprep.mubr.f32.mxu0 0.0
    %390 = vmatmul.mubr.f32.gmra.mxu0 %v305
    %v391 = vpop.f32.mrf.mxu0
    %v392 = vadd.f32 0.0, %v391
    %v393 = vpop.f32.mrf.mxu0
    %394 = vmatprep.mubr.f32.mxu0 0.0
    %395 = vmatmul.mubr.f32.gmra.mxu0 %v306
    %v396 = vpop.f32.mrf.mxu0
    %v397 = vadd.f32 0.0, %v396
    %v398 = vpop.f32.mrf.mxu0
    %399 = vmatprep.mubr.f32.mxu0 0.0
    %400 = vmatmul.mubr.f32.gmra.mxu0 %v307
    %v401 = vpop.f32.mrf.mxu0
    %v402 = vadd.f32 0.0, %v401
    %v403 = vpop.f32.mrf.mxu0
    %404 = vmatprep.mubr.f32.mxu0 0.0
    %405 = vmatmul.mubr.f32.gmra.mxu0 %v308
    %v406 = vpop.f32.mrf.mxu0
    %v407 = vadd.f32 0.0, %v406
    %v408 = vpop.f32.mrf.mxu0
    %409 = vdwg.mxu0
    %s410 = sld [smem:[#allocation2]]
    %v411 = vstv %s410
    %v412 = vadd.f32 %v392, %v411
    %v413 = vadd.f32 %v397, %v411
    %v414 = vadd.f32 %v402, %v411
    %v415 = vadd.f32 %v407, %v411
    %420 = vset.pattern.permute.xlu0 0
    %421 = vperm.xlu0 %420, %v412
    %v422 = vpop.permute.xlu0 %421
    %423 = vset.pattern.permute.xlu0 0
    %424 = vperm.xlu0 %423, %v413
    %v425 = vpop.permute.xlu0 %424
    %426 = vset.pattern.permute.xlu0 0
    %427 = vperm.xlu0 %426, %v414
    %v428 = vpop.permute.xlu0 %427
    %429 = vset.pattern.permute.xlu0 0
    %430 = vperm.xlu0 %429, %v415
    %v431 = vpop.permute.xlu0 %430
    %v432 = vlaneseq
    %v433 = vand.u32 %v432, 127
    %v434 = vlaneseq
    %v435 = vshrl.u32 %v434, 7
    %v436 = vsub.s32 %v433, %v435
    %v437 = vrot.slane %v422, %v436
    %v438 = vadd.s32 %v433, 4294967288
    %v439 = vlaneseq
    %v440 = vshrl.u32 %v439, 7
    %v441 = vsub.s32 %v438, %v440
    %v442 = vrot.slane %v425, %v441
    %vm443 = vcmask 130112
    %v444 = vsel %vm443, %v442, %v437
    %v445 = vlaneseq
    %v446 = vshrl.u32 %v445, 7
    %v447 = vsub.s32 %v433, %v446
    %v448 = vrot.slane %v428, %v447
    %v449 = vlaneseq
    %v450 = vshrl.u32 %v449, 7
    %v451 = vsub.s32 %v438, %v450
    %v452 = vrot.slane %v431, %v451
    %v453 = vsel %vm443, %v452, %v448
    %vm454 = vcmask 1041409
    %v455 = vsel %vm454, %v453, %v444
    %vm457 = vcmask 123904
    %v458 = vsel %vm457, %v455, -inf
    %459 = vmax.xlane.f32.xlu0 %v458
    %v460 = vpop.xlane.xlu0 %459
    %v462 = vlaneseq
    %v463 = vshrl.u32 %v462, 7
    %v464 = vsub.s32 0, %v463
    %v465 = vrot.slane %v460, %v464
    %v466 = vlaneseq
    %v467 = vshrl.u32 %v466, 7
    %v468 = vsub.s32 1, %v467
    %v469 = vrot.slane %v460, %v468
    %v472 = vsub.f32 %v412, %v465
    %v473 = vsub.f32 %v413, %v465
    %v474 = vsub.f32 %v414, %v469
    %v475 = vsub.f32 %v415, %v469
    %v476 = vmul.f32 %v472, 1.442695
    %v477 = vpow.pop %v476
    %v478 = vmul.f32 %v473, 1.442695
    %v479 = vpow.pop %v478
    %v480 = vmul.f32 %v474, 1.442695
    %v481 = vpow.pop %v480
    %v482 = vmul.f32 %v475, 1.442695
    %v483 = vpow.pop %v482
    %488 = vset.pattern.permute.xlu0 0
    %489 = vperm.xlu0 %488, %v477
    %v490 = vpop.permute.xlu0 %489
    %491 = vset.pattern.permute.xlu0 0
    %492 = vperm.xlu0 %491, %v479
    %v493 = vpop.permute.xlu0 %492
    %494 = vset.pattern.permute.xlu0 0
    %495 = vperm.xlu0 %494, %v481
    %v496 = vpop.permute.xlu0 %495
    %497 = vset.pattern.permute.xlu0 0
    %498 = vperm.xlu0 %497, %v483
    %v499 = vpop.permute.xlu0 %498
    %v500 = vlaneseq
    %v501 = vshrl.u32 %v500, 7
    %v502 = vsub.s32 %v433, %v501
    %v503 = vrot.slane %v490, %v502
    %v504 = vlaneseq
    %v505 = vshrl.u32 %v504, 7
    %v506 = vsub.s32 %v438, %v505
    %v507 = vrot.slane %v493, %v506
    %v508 = vsel %vm443, %v507, %v503
    %v509 = vlaneseq
    %v510 = vshrl.u32 %v509, 7
    %v511 = vsub.s32 %v433, %v510
    %v512 = vrot.slane %v496, %v511
    %v513 = vlaneseq
    %v514 = vshrl.u32 %v513, 7
    %v515 = vsub.s32 %v438, %v514
    %v516 = vrot.slane %v499, %v515
    %v517 = vsel %vm443, %v516, %v512
    %v518 = vsel %vm454, %v517, %v508
    %v520 = vsel %vm457, %v518, 0.0
    %521 = vadd.xlane.f32.xlu0 %v520
    %v522 = vpop.xlane.xlu0 %521
    %v523 = vrcp.pop %v522
    %v525 = vlaneseq
    %v526 = vshrl.u32 %v525, 7
    %v527 = vsub.s32 0, %v526
    %v528 = vrot.slane %v523, %v527
    %v529 = vlaneseq
    %v530 = vshrl.u32 %v529, 7
    %v531 = vsub.s32 1, %v530
    %v532 = vrot.slane %v523, %v531
    %v535 = vmul.f32 %v477, %v528
    %v536 = vmul.f32 %v479, %v528
    %v537 = vmul.f32 %v481, %v532
    %v538 = vmul.f32 %v483, %v532
    %541 = vset.pattern.permute.xlu0 0
    %542 = vperm.xlu0 %541, %v535
    %v543 = vpop.permute.xlu0 %542
    %544 = vset.pattern.permute.xlu0 0
    %545 = vperm.xlu0 %544, %v536
    %v546 = vpop.permute.xlu0 %545
    %v547 = vlaneseq
    %v548 = vshrl.u32 %v547, 7
    %v549 = vsub.s32 %v433, %v548
    %v550 = vrot.slane %v543, %v549
    %v551 = vlaneseq
    %v552 = vshrl.u32 %v551, 7
    %v553 = vsub.s32 %v438, %v552
    %v554 = vrot.slane %v546, %v553
    %v555 = vsel %vm443, %v554, %v550
    %vm556 = vcmask 130048
    %v557 = vsel %vm556, %v555, 0
    %559 = vmatprep.subr.mxu0 0.0
    %560 = vmatpush1.msra.mxu0 0.0
    %561 = vmatprep.subr.mxu0 0.0
    %562 = vmatpush1.msra.mxu0 0.0
    %563 = vmatprep.subr.mxu0 0.0
    %564 = vmatpush1.msra.mxu0 0.0
    %565 = vmatprep.subr.mxu0 0.0
    %566 = vmatpush1.msra.mxu0 0.0
    %567 = vmatprep.subr.mxu0 0.0
    %568 = vmatpush1.msra.mxu0 0.0
    %569 = vmatprep.subr.mxu0 0.0
    %570 = vmatpush1.msra.mxu0 0.0
    %571 = vmatprep.subr.mxu0 0.0
    %572 = vmatpush1.msra.mxu0 0.0
    %573 = vmatprep.subr.mxu0 0.0
    %574 = vmatpush1.msra.mxu0 0.0
    %575 = vmatprep.subr.mxu0 0.0
    %576 = vmatpush1.msra.mxu0 0.0
    %577 = vmatprep.subr.mxu0 0.0
    %578 = vmatpush1.msra.mxu0 0.0
    %579 = vmatprep.subr.mxu0 0.0
    %580 = vmatpush1.msra.mxu0 0.0
    %581 = vmatprep.subr.mxu0 0.0
    %582 = vmatpush1.msra.mxu0 0.0
    %583 = vmatprep.subr.mxu0 0.0
    %584 = vmatpush1.msra.mxu0 0.0
    %585 = vmatprep.subr.mxu0 0.0
    %586 = vmatpush1.msra.mxu0 0.0
    %587 = vmatprep.subr.mxu0 0.0
    %588 = vmatpush1.msra.mxu0 %v63
    %589 = vmatprep.subr.mxu0 0.0
    %590 = vmatpush1.msra.mxu0 %v62
    %591 = vmatprep.subr.mxu0 0.0
    %592 = vmatpush2.msra.mxu0 0.0
    %593 = vmatprep.subr.mxu0 0.0
    %594 = vmatpush2.msra.mxu0 0.0
    %595 = vmatprep.subr.mxu0 0.0
    %596 = vmatpush2.msra.mxu0 0.0
    %597 = vmatprep.subr.mxu0 0.0
    %598 = vmatpush2.msra.mxu0 0.0
    %599 = vmatprep.subr.mxu0 0.0
    %600 = vmatpush2.msra.mxu0 0.0
    %601 = vmatprep.subr.mxu0 0.0
    %602 = vmatpush2.msra.mxu0 0.0
    %603 = vmatprep.subr.mxu0 0.0
    %604 = vmatpush2.msra.mxu0 0.0
    %605 = vmatprep.subr.mxu0 0.0
    %606 = vmatpush2.msra.mxu0 0.0
    %607 = vmatprep.subr.mxu0 0.0
    %608 = vmatpush2.msra.mxu0 0.0
    %609 = vmatprep.subr.mxu0 0.0
    %610 = vmatpush2.msra.mxu0 0.0
    %611 = vmatprep.subr.mxu0 0.0
    %612 = vmatpush2.msra.mxu0 0.0
    %613 = vmatprep.subr.mxu0 0.0
    %614 = vmatpush2.msra.mxu0 0.0
    %615 = vmatprep.subr.mxu0 0.0
    %616 = vmatpush2.msra.mxu0 0.0
    %617 = vmatprep.subr.mxu0 0.0
    %618 = vmatpush2.msra.mxu0 0.0
    %619 = vmatprep.subr.mxu0 0.0
    %620 = vmatpush2.msra.mxu0 0.0
    %621 = vmatprep.subr.mxu0 0.0
    %622 = vmatpush2.msra.mxu0 0.0
    %623 = vmatprep.mubr.f32.mxu0 0.0
    %624 = vmatmul.mubr.f32.gmra.mxu0 %v557
    %v625 = vpop.f32.mrf.mxu0
    %v626 = vadd.f32 0.0, %v625
    %v627 = vpop.f32.mrf.mxu0
    %628 = vdwg.mxu0
    %631 = vset.pattern.permute.xlu0 0
    %632 = vperm.xlu0 %631, %v537
    %v633 = vpop.permute.xlu0 %632
    %634 = vset.pattern.permute.xlu0 0
    %635 = vperm.xlu0 %634, %v538
    %v636 = vpop.permute.xlu0 %635
    %v637 = vlaneseq
    %v638 = vshrl.u32 %v637, 7
    %v639 = vsub.s32 %v433, %v638
    %v640 = vrot.slane %v633, %v639
    %v641 = vlaneseq
    %v642 = vshrl.u32 %v641, 7
    %v643 = vsub.s32 %v438, %v642
    %v644 = vrot.slane %v636, %v643
    %v645 = vsel %vm443, %v644, %v640
    %v646 = vsel %vm556, %v645, 0
    %648 = vmatprep.subr.mxu0 0.0
    %649 = vmatpush1.msra.mxu0 0.0
    %650 = vmatprep.subr.mxu0 0.0
    %651 = vmatpush1.msra.mxu0 0.0
    %652 = vmatprep.subr.mxu0 0.0
    %653 = vmatpush1.msra.mxu0 0.0
    %654 = vmatprep.subr.mxu0 0.0
    %655 = vmatpush1.msra.mxu0 0.0
    %656 = vmatprep.subr.mxu0 0.0
    %657 = vmatpush1.msra.mxu0 0.0
    %658 = vmatprep.subr.mxu0 0.0
    %659 = vmatpush1.msra.mxu0 0.0
    %660 = vmatprep.subr.mxu0 0.0
    %661 = vmatpush1.msra.mxu0 0.0
    %662 = vmatprep.subr.mxu0 0.0
    %663 = vmatpush1.msra.mxu0 0.0
    %664 = vmatprep.subr.mxu0 0.0
    %665 = vmatpush1.msra.mxu0 0.0
    %666 = vmatprep.subr.mxu0 0.0
    %667 = vmatpush1.msra.mxu0 0.0
    %668 = vmatprep.subr.mxu0 0.0
    %669 = vmatpush1.msra.mxu0 0.0
    %670 = vmatprep.subr.mxu0 0.0
    %671 = vmatpush1.msra.mxu0 0.0
    %672 = vmatprep.subr.mxu0 0.0
    %673 = vmatpush1.msra.mxu0 0.0
    %674 = vmatprep.subr.mxu0 0.0
    %675 = vmatpush1.msra.mxu0 0.0
    %676 = vmatprep.subr.mxu0 0.0
    %677 = vmatpush1.msra.mxu0 %v65
    %678 = vmatprep.subr.mxu0 0.0
    %679 = vmatpush1.msra.mxu0 %v64
    %680 = vmatprep.subr.mxu0 0.0
    %681 = vmatpush2.msra.mxu0 0.0
    %682 = vmatprep.subr.mxu0 0.0
    %683 = vmatpush2.msra.mxu0 0.0
    %684 = vmatprep.subr.mxu0 0.0
    %685 = vmatpush2.msra.mxu0 0.0
    %686 = vmatprep.subr.mxu0 0.0
    %687 = vmatpush2.msra.mxu0 0.0
    %688 = vmatprep.subr.mxu0 0.0
    %689 = vmatpush2.msra.mxu0 0.0
    %690 = vmatprep.subr.mxu0 0.0
    %691 = vmatpush2.msra.mxu0 0.0
    %692 = vmatprep.subr.mxu0 0.0
    %693 = vmatpush2.msra.mxu0 0.0
    %694 = vmatprep.subr.mxu0 0.0
    %695 = vmatpush2.msra.mxu0 0.0
    %696 = vmatprep.subr.mxu0 0.0
    %697 = vmatpush2.msra.mxu0 0.0
    %698 = vmatprep.subr.mxu0 0.0
    %699 = vmatpush2.msra.mxu0 0.0
    %700 = vmatprep.subr.mxu0 0.0
    %701 = vmatpush2.msra.mxu0 0.0
    %702 = vmatprep.subr.mxu0 0.0
    %703 = vmatpush2.msra.mxu0 0.0
    %704 = vmatprep.subr.mxu0 0.0
    %705 = vmatpush2.msra.mxu0 0.0
    %706 = vmatprep.subr.mxu0 0.0
    %707 = vmatpush2.msra.mxu0 0.0
    %708 = vmatprep.subr.mxu0 0.0
    %709 = vmatpush2.msra.mxu0 0.0
    %710 = vmatprep.subr.mxu0 0.0
    %711 = vmatpush2.msra.mxu0 0.0
    %712 = vmatprep.mubr.f32.mxu0 0.0
    %713 = vmatmul.mubr.f32.gmra.mxu0 %v646
    %v714 = vpop.f32.mrf.mxu0
    %v715 = vadd.f32 0.0, %v714
    %v716 = vpop.f32.mrf.mxu0
    %717 = vdwg.mxu0
    %v720 = vrot.slane %v715, 7
    %v721 = vsel %vm454, %v720, %v626
    %723 = vst [vmem:[#allocation8] sm:$0x3] %v721
    %v724 = vsel %vm454, %v645, %v555
    %726 = vst.msk [vmem:[#allocation9] sm:$0x3] %vm457, %v724
    // Predicated region
    $region42: #{bahdanau_attention.1} parent=1 // pred_check
      _
    $region43: #{bahdanau_attention.1} parent=1 // pred_check_branch
      %728 = sbr.rel (0) target = $region45
    $region44: #{bahdanau_attention.1} parent=1 // pred_region
      %s730 = ssub.s32 32, 32
      %731 = vsyncadd [#allocation5], %s730
      %s733 = sshll.u32 [#allocation8], 4
      %s734 = int_to_ptr.vmem [resolvable:$true] %s733
      %736 = dma.vmem_to_hbm [thread:$0]  %s734, 32, %s8, [#allocation5]
    $region45: #{bahdanau_attention.1} parent=1 // pred_fallthru
      _
    // Predicated region
    $region46: #{bahdanau_attention.1} parent=1 // pred_check
      _
    $region47: #{bahdanau_attention.1} parent=1 // pred_check_branch
      %738 = sbr.rel (0) target = $region49
    $region48: #{bahdanau_attention.1} parent=1 // pred_region
      %s740 = ssub.s32 32, 32
      %741 = vsyncadd [#allocation10], %s740
      %s743 = sshll.u32 [#allocation9], 4
      %s744 = int_to_ptr.vmem [resolvable:$true] %s743
      %746 = dma.vmem_to_hbm [thread:$0]  %s744, 32, %s9, [#allocation10]
    $region49: #{bahdanau_attention.1} parent=1 // pred_fallthru
      _
    // Predicated region
    $region50: #{bahdanau_attention.1} parent=1 // pred_check
      _
    $region51: #{bahdanau_attention.1} parent=1 // pred_check_branch
      %748 = sbr.rel (0) target = $region53
    $region52: #{bahdanau_attention.1} parent=1 // pred_region
      %749 = dma.done [#allocation5], 32
    $region53: #{bahdanau_attention.1} parent=1 // pred_fallthru
      _
    // Predicated region
    $region54: #{bahdanau_attention.1} parent=1 // pred_check
      _
    $region55: #{bahdanau_attention.1} parent=1 // pred_check_branch
      %751 = sbr.rel (0) target = $region57
    $region56: #{bahdanau_attention.1} parent=1 // pred_region
      %752 = dma.done [#allocation10], 32
    $region57: #{bahdanau_attention.1} parent=1 // pred_fallthru
      _
    %753 = vsyncpa [#allocation4], 1
    %754 = vsyncpa [#allocation7], 1
    %755 = vsyncpa [#allocation5], 1
    %756 = vsyncpa [#allocation10], 1

</llo_original>
